<compile_context>
chip_gen: v7x
topology: tpu7x:2x2x1
jax: 0.10.0
libtpu: 0.0.40
codegen_flags: <defaults>
</compile_context>

<pallas_src>
import functools

import jax
import jax.numpy as jnp
from jax.experimental import pallas as pl
from jax.experimental.pallas import tpu as pltpu

EPS = 1e-6
_NEG_BIG = -1e30   # "minus infinity" that is safe through the MXU and exp()


def _round_up(x, m):
    return ((x + m - 1) // m) * m


def _gat_kernel(h_ref, w_ref, b_ref, mtgt_ref, o_ref, acc_ref, m_ref, *, d_o, eps):
    """One (N-tile, E-tile) step of the fused GAT edge-softmax layer.

    Fused projection column layout (width d_op, lane padded):
        [0:d_o]   f(h)          -> relu -> numerator features
        d_o       constant 1.0  -> softmax denominator column
        d_o+1     w(h) (+ -1e30 on padded edge rows) -> attention logit
        rest      zero padding
    """
    e_idx = pl.program_id(1)
    n_e = pl.num_programs(1)

    @pl.when(e_idx == 0)
    def _():
        acc_ref[...] = jnp.zeros_like(acc_ref)
        m_ref[...] = jnp.full_like(m_ref, -jnp.inf)

    # Single fused projection matmul (K = 2*d_i + 1).
    ya = jnp.dot(h_ref[...], w_ref[...],
                 preferred_element_type=jnp.float32) + b_ref[...]     # (tE, d_op)

    a = ya[:, d_o + 1:d_o + 2]            # (tE, 1); ~ -1e30 on padded edge rows

    # Flash-style online global max; rescale the accumulator when it grows.
    m_old = m_ref[...]                                    # (1, 1)
    m_new = jnp.maximum(m_old, jnp.max(a, keepdims=True))
    m_ref[...] = m_new
    scale = jnp.exp(m_old - m_new)          # (1,1); ==1 when stable, 0 on 1st tile

    p = jnp.exp(a - m_new)                  # (tE, 1); exactly 0 on padded rows

    # cols<d_o: relu(y)*p, col d_o: p (denominator), col d_o+1: junk (never read),
    # pad cols: 0.  Down-cast once so the aggregation matmul is bf16 x bf16.
    operand = (jnp.maximum(ya, 0.0) * p).astype(jnp.bfloat16)         # (tE, d_op)

    acc_ref[...] = acc_ref[...] * scale + jnp.dot(
        mtgt_ref[...], operand, preferred_element_type=jnp.float32)

    @pl.when(e_idx == n_e - 1)
    def _():
        acc = acc_ref[...]
        inv = pl.reciprocal(acc[:, d_o:d_o + 1] + eps, approx=True)
        o_ref[...] = (acc * inv).astype(o_ref.dtype)


def _vmem_limit_bytes(per_step_bytes):
    """Generation-aware scoped-VMEM limit (v7x: 64 MiB phys, v5e/v6e: 128 MiB)."""
    try:
        phys = int(pltpu.get_tpu_info().vmem_capacity_bytes)
    except Exception:
        phys = 64 << 20                        # assume the smallest (v7x) on failure
    cap = min((phys * 3) // 4, 100 << 20)      # ~48 MiB on v7x, ~96 MiB on v5e/v6e
    return int(min(cap, max(32 << 20, 2 * per_step_bytes)))


def gat_layer_edge_softmax(x, src, tgt, wf, bf, ww, bw, mtgt=None, *,
                           eps=EPS, tile_e=2048, tile_n=1024):
    """Pallas implementation of GATLayerEdgeSoftmax.forward.

    x    : (N, d_i)     float32 node features
    src  : (E,)         int32 source node per edge
    tgt  : (E,)         int32 target node per edge
    wf   : (2*d_i, d_o) float32 f.weight (pre-transposed)
    bf   : (d_o,)       float32 f.bias
    ww   : (2*d_i, 1)   float32 w.weight (pre-transposed)
    bw   : (1,)         float32 w.bias
    mtgt : optional (N, E) float32 target-node->edge incidence; if None it is
           built directly (padded, bf16, exact) from tgt.
    (adj / Msrc from the torch signature are unused by the forward math.)
    returns o : (N, d_o) float32
    """
    n, d_i = x.shape
    d_o = wf.shape[1]
    e = src.shape[0]
    assert e > 0 and n > 0, "degenerate empty graph not supported"

    d_h = 2 * d_i + 1                 # +1 pad-indicator input column
    d_op = _round_up(d_o + 2, 128)    # f cols | ones col | attention col | pad

    # Tile sizes (lane/sublane aligned).
    t_e = min(_round_up(tile_e, 128), _round_up(e, 128))
    n8 = _round_up(n, 8)
    t_n = min(_round_up(tile_n, 8), n8)
    if t_n >= n8 and n8 >= 16:
        # Keep >= 2 N-tiles so the "parallel" axis can shard across both v7x cores.
        t_n = _round_up((n + 1) // 2, 8)
    e_pad = _round_up(e, t_e)
    n_pad = _round_up(n, t_n)

    # Fused projection weight / bias (see _gat_kernel docstring for layout).
    w_fused = jnp.zeros((d_h, d_op), jnp.float32)
    w_fused = w_fused.at[:2 * d_i, :d_o].set(wf)
    w_fused = w_fused.at[:2 * d_i, d_o + 1].set(ww[:, 0])
    w_fused = w_fused.at[2 * d_i, d_o + 1].set(_NEG_BIG)   # pad rows -> logit -1e30
    b_fused = jnp.zeros((1, d_op), jnp.float32)
    b_fused = b_fused.at[0, :d_o].set(bf)
    b_fused = b_fused.at[0, d_o].set(1.0)                  # ones (denominator) column
    b_fused = b_fused.at[0, d_o + 1].set(bw[0])

    # Edge feature gather (data-dependent) stays in plain JAX; single (E, 2*d_i)
    # array, no separate hsrc/htgt and no concat copy.
    # TODO(synk): move this gather in-kernel (x resident in VMEM + scalar-prefetched
    # src/tgt) to drop the (E, 2*d_i) HBM materialization entirely.
    h = x[jnp.stack([src, tgt], axis=1)].reshape(e, 2 * d_i)
    h = jnp.pad(h, ((0, e_pad - e), (0, 1)))
    h = h.at[:, 2 * d_i].set((jnp.arange(e_pad) >= e).astype(jnp.float32))

    # Target incidence matrix, built directly as padded bf16 (exact for 0/1).
    if mtgt is None:
        tgt_pad = jnp.pad(tgt.astype(jnp.int32), (0, e_pad - e), constant_values=-1)
        mtgt_p = (jnp.arange(n_pad, dtype=jnp.int32)[:, None]
                  == tgt_pad[None, :]).astype(jnp.bfloat16)
    else:
        mtgt_p = jnp.pad(mtgt, ((0, n_pad - n), (0, e_pad - e))).astype(jnp.bfloat16)

    grid = (n_pad // t_n, e_pad // t_e)

    # Per-step VMEM footprint (double-buffered streams + scratch).
    per_step = (2 * t_e * d_h * 4          # h tile
                + 2 * d_h * d_op * 4       # fused weight
                + 2 * d_op * 4             # bias
                + 2 * t_n * t_e * 2        # mtgt tile (bf16)
                + 2 * t_n * d_op * 4       # output block
                + t_n * d_op * 4           # accumulator scratch
                + (1 << 16))               # misc
    vmem_limit = _vmem_limit_bytes(per_step)

    kernel = functools.partial(_gat_kernel, d_o=d_o, eps=eps)

    o_full = pl.pallas_call(
        kernel,
        out_shape=jax.ShapeDtypeStruct((n_pad, d_op), jnp.float32),
        grid_spec=pltpu.PrefetchScalarGridSpec(
            num_scalar_prefetch=0,
            grid=grid,
            in_specs=[
                pl.BlockSpec((t_e, d_h), lambda i, k: (k, 0)),     # edge features
                pl.BlockSpec((d_h, d_op), lambda i, k: (0, 0)),    # fused weight
                pl.BlockSpec((1, d_op), lambda i, k: (0, 0)),      # fused bias
                # TODO(synk): pipeline_mode=pl.Buffered(3) here if profiles show
                # exposed Mtgt DMA on v5e.
                pl.BlockSpec((t_n, t_e), lambda i, k: (i, k)),     # mtgt (bf16)
            ],
            out_specs=pl.BlockSpec((t_n, d_op), lambda i, k: (i, 0)),
            scratch_shapes=[
                pltpu.VMEM((t_n, d_op), jnp.float32),   # numerator/denominator acc
                pltpu.VMEM((1, 1), jnp.float32),        # running global max
            ],
        ),
        compiler_params=pltpu.CompilerParams(
            dimension_semantics=("parallel", "arbitrary"),
            vmem_limit_bytes=vmem_limit,
        ),
    )(h, w_fused, b_fused, mtgt_p)

    # TODO(synk): replace the dense (N,E) incidence matmul with a scalar-prefetched
    # tgt-index segment-sum (O(E*d_o) traffic instead of O(N*E)); pack multiple
    # heads into the lane dim to fill the 256-wide MXU on v6e/v7x when d_o is small.
    return o_full[:n, :d_o]


def _xavier_uniform(key, shape_out_in):
    fan_out, fan_in = shape_out_in
    bound = jnp.sqrt(6.0 / (fan_in + fan_out))
    return jax.random.uniform(key, shape_out_in, jnp.float32, -bound, bound)


if __name__ == "__main__":
    # Small synthetic graph consistent with the module's forward signature.
    N = 40        # nodes
    E = 200       # edges
    D_I = 16      # input node feature dim
    D_O = 32      # output feature dim

    key = jax.random.PRNGKey(0)
    k_x, k_src, k_tgt, k_wf, k_bf, k_ww, k_bw = jax.random.split(key, 7)

    x = jax.random.normal(k_x, (N, D_I), jnp.float32)
    src = jax.random.randint(k_src, (E,), 0, N, jnp.int32)
    tgt = jax.random.randint(k_tgt, (E,), 0, N, jnp.int32)

    # Parameters mimicking the module's __init__ (xavier_uniform weights).
    wf_t = _xavier_uniform(k_wf, (D_O, 2 * D_I))   # f.weight (d_o, 2*d_i)
    ww_t = _xavier_uniform(k_ww, (1, 2 * D_I))     # w.weight (1, 2*d_i)
    b_bound = 1.0 / jnp.sqrt(2.0 * D_I)
    bf = jax.random.uniform(k_bf, (D_O,), jnp.float32, -b_bound, b_bound)
    bw = jax.random.uniform(k_bw, (1,), jnp.float32, -b_bound, b_bound)
    wf = wf_t.T    # (2*d_i, d_o)
    ww = ww_t.T    # (2*d_i, 1)

    # Pure-JAX reference (same math as the PyTorch module, f32 throughout).
    mtgt_f32 = (jnp.arange(N)[:, None] == tgt[None, :]).astype(jnp.float32)
    h_cat = jnp.concatenate([x[src], x[tgt]], axis=1)
    y_ref = jnp.maximum(h_cat @ wf + bf[None, :], 0.0)
    a_ref = h_cat @ ww + bw[None, :]
    a_exp = jnp.exp(a_ref - jnp.max(a_ref, axis=0, keepdims=True))
    a_sum = mtgt_f32 @ a_exp + EPS
    o_ref = (mtgt_f32 @ (y_ref * a_exp)) / a_sum

    # 1) Small tiles: exercises multi-E-tile accumulation, the online max and
    #    the folded edge-padding path (E=200 -> e_pad=256).
    o_small = gat_layer_edge_softmax(x, src, tgt, wf, bf, ww, bw,
                                     tile_e=128, tile_n=16)
    o_small = jax.block_until_ready(o_small)

    # 2) Default (production-sized) tiles: single E tile, 2 parallel N tiles.
    o_big = gat_layer_edge_softmax(x, src, tgt, wf, bf, ww, bw)
    o_big = jax.block_until_ready(o_big)

    for o in (o_small, o_big):
        assert o.shape == (N, D_O)
        max_err = float(jnp.max(jnp.abs(o - o_ref)))
        # bf16 aggregation operands carry ~2^-9 relative rounding per term.
        assert jnp.allclose(o, o_ref, atol=3e-3, rtol=1e-2), max_err

    print("KERNEL_OK")
</pallas_src>

<mosaic_0001>
module attributes {stable_mosaic.version = 11 : i64} {
  func.func @_gat_kernel(%arg0: i32, %arg1: i32, %arg2: memref<128x33xf32, #tpu.memory_space<vmem>>, %arg3: memref<33x128xf32, #tpu.memory_space<vmem>>, %arg4: memref<1x128xf32, #tpu.memory_space<vmem>>, %arg5: memref<16x128xbf16, #tpu.memory_space<vmem>>, %arg6: memref<16x128xf32, #tpu.memory_space<vmem>>, %arg7: memref<16x128xf32, #tpu.memory_space<vmem>>, %arg8: memref<1x1xf32, #tpu.memory_space<vmem>>) attributes {dimension_semantics = [#tpu.dimension_semantics<parallel>, #tpu.dimension_semantics<arbitrary>], iteration_bounds = array<i64: 3, 2>, scalar_prefetch = 0 : i64, scratch_operands = 2 : i64, tpu.core_type = #tpu.core_type<tc>, window_params = [{transform_indices = @transform_0, window_bounds = array<i64: 128, 33>}, {pipeline_mode = #tpu.pipeline_mode<synchronous>, transform_indices = @transform_1, window_bounds = array<i64: 33, 128>}, {pipeline_mode = #tpu.pipeline_mode<synchronous>, transform_indices = @transform_2, window_bounds = array<i64: 1, 128>}, {transform_indices = @transform_3, window_bounds = array<i64: 16, 128>}, {transform_indices = @transform_4, window_bounds = array<i64: 16, 128>}]} {
    %c0_i32 = arith.constant 0 : i32
    %0 = arith.cmpi eq, %arg1, %c0_i32 : i32
    %1 = arith.extui %0 : i1 to i32
    %c0_i32_0 = arith.constant 0 : i32
    %2 = arith.cmpi ne, %1, %c0_i32_0 : i32
    scf.if %2 {
      %cst_20 = arith.constant 0.000000e+00 : f32
      %38 = vector.broadcast %cst_20 : f32 to vector<16x128xf32>
      %c0_21 = arith.constant 0 : index
      %c0_22 = arith.constant 0 : index
      %39 = vector.load %arg7[%c0_21, %c0_22] : memref<16x128xf32, #tpu.memory_space<vmem>>, vector<16x128xf32>
      tpu.vector_store %arg7[%c0_21, %c0_22], %38 {strides = array<i32>} : memref<16x128xf32, #tpu.memory_space<vmem>>, vector<16x128xf32>,
      %cst_23 = arith.constant 0xFF800000 : f32
      %40 = vector.broadcast %cst_23 : f32 to vector<1x1xf32>
      %c0_24 = arith.constant 0 : index
      %c0_25 = arith.constant 0 : index
      %41 = vector.load %arg8[%c0_24, %c0_25] : memref<1x1xf32, #tpu.memory_space<vmem>>, vector<1x1xf32>
      tpu.vector_store %arg8[%c0_24, %c0_25], %40 {strides = array<i32>} : memref<1x1xf32, #tpu.memory_space<vmem>>, vector<1x1xf32>,
    } else {
    }
    %c0 = arith.constant 0 : index
    %c0_1 = arith.constant 0 : index
    %3 = vector.load %arg2[%c0, %c0_1] : memref<128x33xf32, #tpu.memory_space<vmem>>, vector<128x33xf32>
    %c0_2 = arith.constant 0 : index
    %c0_3 = arith.constant 0 : index
    %4 = vector.load %arg3[%c0_2, %c0_3] : memref<33x128xf32, #tpu.memory_space<vmem>>, vector<33x128xf32>
    %cst = arith.constant dense<0.000000e+00> : vector<128x128xf32>
    %5 = tpu.matmul %3, %4, %cst {dimension_numbers = #tpu.dot_dimension_numbers<[1], [0], [0], [1], [0, 0, 1, 1], [], []>} : vector<128x33xf32>, vector<33x128xf32>, vector<128x128xf32> -> vector<128x128xf32>
    %c0_4 = arith.constant 0 : index
    %c0_5 = arith.constant 0 : index
    %6 = vector.load %arg4[%c0_4, %c0_5] : memref<1x128xf32, #tpu.memory_space<vmem>>, vector<1x128xf32>
    %7 = vector.broadcast %6 : vector<1x128xf32> to vector<128x128xf32>
    %8 = arith.addf %5, %7 : vector<128x128xf32>
    %9 = vector.extract_strided_slice %8 {offsets = [0, 33], sizes = [128, 1], strides = [1, 1]} : vector<128x128xf32> to vector<128x1xf32>
    %c0_6 = arith.constant 0 : index
    %c0_7 = arith.constant 0 : index
    %10 = vector.load %arg8[%c0_6, %c0_7] : memref<1x1xf32, #tpu.memory_space<vmem>>, vector<1x1xf32>
    %11 = vector.shape_cast %9 : vector<128x1xf32> to vector<1x128x1xf32>
    %cst_8 = arith.constant dense<0xFF800000> : vector<1xf32>
    %12 = vector.multi_reduction <maximumf>, %11, %cst_8 [1, 2] : vector<1x128x1xf32> to vector<1xf32>
    %13 = vector.shape_cast %12 : vector<1xf32> to vector<1x1x1xf32>
    %14 = vector.extract %13[0, 0, 0] : f32 from vector<1x1x1xf32>
    %15 = vector.broadcast %14 : f32 to vector<1x1xf32>
    %16 = arith.maximumf %10, %15 : vector<1x1xf32>
    %c0_9 = arith.constant 0 : index
    %c0_10 = arith.constant 0 : index
    %17 = vector.load %arg8[%c0_9, %c0_10] : memref<1x1xf32, #tpu.memory_space<vmem>>, vector<1x1xf32>
    tpu.vector_store %arg8[%c0_9, %c0_10], %16 {strides = array<i32>} : memref<1x1xf32, #tpu.memory_space<vmem>>, vector<1x1xf32>,
    %18 = arith.subf %10, %16 : vector<1x1xf32>
    %19 = math.exp %18 : vector<1x1xf32>
    %20 = vector.broadcast %16 : vector<1x1xf32> to vector<128x1xf32>
    %21 = arith.subf %9, %20 : vector<128x1xf32>
    %22 = math.exp %21 : vector<128x1xf32>
    %cst_11 = arith.constant 0.000000e+00 : f32
    %23 = vector.broadcast %cst_11 : f32 to vector<128x128xf32>
    %24 = arith.maximumf %8, %23 : vector<128x128xf32>
    %25 = vector.broadcast %22 : vector<128x1xf32> to vector<128x128xf32>
    %26 = arith.mulf %24, %25 : vector<128x128xf32>
    %27 = arith.truncf %26 : vector<128x128xf32> to vector<128x128xbf16>
    %c0_12 = arith.constant 0 : index
    %c0_13 = arith.constant 0 : index
    %28 = vector.load %arg7[%c0_12, %c0_13] : memref<16x128xf32, #tpu.memory_space<vmem>>, vector<16x128xf32>
    %29 = vector.broadcast %19 : vector<1x1xf32> to vector<16x128xf32>
    %30 = arith.mulf %28, %29 : vector<16x128xf32>
    %c0_14 = arith.constant 0 : index
    %c0_15 = arith.constant 0 : index
    %31 = vector.load %arg5[%c0_14, %c0_15] : memref<16x128xbf16, #tpu.memory_space<vmem>>, vector<16x128xbf16>
    %cst_16 = arith.constant dense<0.000000e+00> : vector<16x128xf32>
    %32 = tpu.matmul %31, %27, %cst_16 {dimension_numbers = #tpu.dot_dimension_numbers<[1], [0], [0], [1], [0, 0, 1, 1], [], []>} : vector<16x128xbf16>, vector<128x128xbf16>, vector<16x128xf32> -> vector<16x128xf32>
    %33 = arith.addf %30, %32 : vector<16x128xf32>
    %c0_17 = arith.constant 0 : index
    %c0_18 = arith.constant 0 : index
    %34 = vector.load %arg7[%c0_17, %c0_18] : memref<16x128xf32, #tpu.memory_space<vmem>>, vector<16x128xf32>
    tpu.vector_store %arg7[%c0_17, %c0_18], %33 {strides = array<i32>} : memref<16x128xf32, #tpu.memory_space<vmem>>, vector<16x128xf32>,
    %c1_i32 = arith.constant 1 : i32
    %35 = arith.cmpi eq, %arg1, %c1_i32 : i32
    %36 = arith.extui %35 : i1 to i32
    %c0_i32_19 = arith.constant 0 : i32
    %37 = arith.cmpi ne, %36, %c0_i32_19 : i32
    scf.if %37 {
      %c0_20 = arith.constant 0 : index
      %c0_21 = arith.constant 0 : index
      %38 = vector.load %arg7[%c0_20, %c0_21] : memref<16x128xf32, #tpu.memory_space<vmem>>, vector<16x128xf32>
      %39 = vector.extract_strided_slice %38 {offsets = [0, 32], sizes = [16, 1], strides = [1, 1]} : vector<16x128xf32> to vector<16x1xf32>
      %cst_22 = arith.constant 9.99999997E-7 : f32
      %40 = vector.broadcast %cst_22 : f32 to vector<16x1xf32>
      %41 = arith.addf %39, %40 : vector<16x1xf32>
      %42 = tpu.reciprocal %41 {approx = true} : vector<16x1xf32> -> vector<16x1xf32>
      %43 = vector.broadcast %42 : vector<16x1xf32> to vector<16x128xf32>
      %44 = arith.mulf %38, %43 : vector<16x128xf32>
      %c0_23 = arith.constant 0 : index
      %c0_24 = arith.constant 0 : index
      %45 = vector.load %arg6[%c0_23, %c0_24] : memref<16x128xf32, #tpu.memory_space<vmem>>, vector<16x128xf32>
      tpu.vector_store %arg6[%c0_23, %c0_24], %44 {strides = array<i32>} : memref<16x128xf32, #tpu.memory_space<vmem>>, vector<16x128xf32>,
    } else {
    }
    return
  }
  func.func @transform_0(%arg0: i32, %arg1: i32) -> (i32, i32) {
    %c0_i32 = arith.constant 0 : i32
    %c0_i32_0 = arith.constant 0 : i32
    return %arg1, %c0_i32 : i32, i32
  }
  func.func @transform_1(%arg0: i32, %arg1: i32) -> (i32, i32) {
    %c0_i32 = arith.constant 0 : i32
    %c0_i32_0 = arith.constant 0 : i32
    %c0_i32_1 = arith.constant 0 : i32
    return %c0_i32, %c0_i32_0 : i32, i32
  }
  func.func @transform_2(%arg0: i32, %arg1: i32) -> (i32, i32) {
    %c0_i32 = arith.constant 0 : i32
    %c0_i32_0 = arith.constant 0 : i32
    %c0_i32_1 = arith.constant 0 : i32
    return %c0_i32, %c0_i32_0 : i32, i32
  }
  func.func @transform_3(%arg0: i32, %arg1: i32) -> (i32, i32) {
    %c0_i32 = arith.constant 0 : i32
    return %arg0, %arg1 : i32, i32
  }
  func.func @transform_4(%arg0: i32, %arg1: i32) -> (i32, i32) {
    %c0_i32 = arith.constant 0 : i32
    %c0_i32_0 = arith.constant 0 : i32
    return %arg0, %c0_i32 : i32, i32
  }
}

</mosaic_0001>

<llo_original>
// kernel: tpu_custom_call.1
$region0: #{tpu_custom_call.1}
  #allocation0 [shape = 'u32[]', space=smem, size = 0x4, offset = 0x4, fixed_abs, tag = 'smem constant byte address 0x4 - core index']
  #allocation1 [shape = 'u32[144,128]{1,0:T(1,128)}', space=vmem, size = 0x12000, scoped, tag = 'internal scratch']
  #allocation2 [shape = 'f32[16,128]{1,0:T(8,128)}', space=vmem, size = 0x2000, scoped, tag = 'scratch operand']
  #allocation3 [shape = 'f32[1,1]{1,0:T(1,128)}', space=vmem, size = 0x200, scoped, tag = 'scratch operand']
  %s0 = inlined_call_operand.vmem [shape: f32[256,33], index: 0, kind: input, shape index: {}]
  %s1 = inlined_call_operand.vmem [shape: f32[33,128], index: 1, kind: input, shape index: {}]
  %s2 = inlined_call_operand.vmem [shape: f32[1,128], index: 2, kind: input, shape index: {}]
  %s3 = inlined_call_operand.vmem [shape: bf16[48,256], index: 3, kind: input, shape index: {}]
  %s4 = inlined_call_operand.hbm [shape: f32[48,128], index: 4, kind: output, shape index: {}]
  %s5 = sld [smem:[#allocation0]]
  $region98: #{tpu_custom_call.1} parent=0
    _
  %s7 = ssub.s32 1, %s5
  %s8 = scalar_select 0, %s7, %s5
  $region1: #{tpu_custom_call.1} parent=0
    #allocation4 [shape = 'u8[8192]{0}', space=vmem, size = 0x2000, scoped, tag = 'input window, operand 3']
    #allocation5 [shape = 'u8[16384]{0}', space=vmem, size = 0x4000, scoped, tag = 'output window, operand 0']
    #allocation6 [shape = 's32[2]{0}', space=sflag, size = 0x8, scoped, tag = 'scoped memory for tpu_custom_call.1']
    %9 = vsyncpa [#allocation6], 0
    %s10 = scalar_lea.sflag [#allocation6], 1
    %11 = vsyncpa %s10, 0
    loop: start=0, step=1, limit=8
    $region2: #{tpu_custom_call.1} parent=1 // loop_pre_header
      _
    $region3: #{tpu_custom_call.1} parent=1 // loop_header
      %s13 = sphi 0, %s17
      %p14 = scmp.ge.s32.totalorder %s13, 8
      %s20 = sphi 0, %s32
      %s21 = sphi 0, %s28
      %s22 = sphi 0, %s20
      %s23 = sphi 0, %s21
      %s24 = sphi 0, %s22
      %s25 = sphi 0, %s23
      %s35 = sphi 0, %s37
      %s38 = sphi 0, %s35
      %s39 = sphi 0, %s38
      %s55 = sphi 0, %s39
      %s59 = sphi 0, %s59
      %s61 = sphi 0, %s59
      %s62 = sphi 0, %s61
      %s76 = sphi 0, %s62
      %s80 = sphi 0, %s80
      %s82 = sphi 0, %s80
      %s83 = sphi 0, %s82
      %s97 = sphi 0, %s83
      %s105 = sphi 0, %s107
      %s108 = sphi 0, %s105
      %s109 = sphi 0, %s108
      %s125 = sphi 0, %s109
      %s131 = sphi 0, %s133
      %s134 = sphi 0, %s131
      %s135 = sphi 0, %s134
      %s151 = sphi 0, %s135
    $region4: #{tpu_custom_call.1} parent=1 // loop_header_branch
      %16 = sbr.rel (%p14) target = $region8
    $region5: #{tpu_custom_call.1} parent=1 // loop_body
      %s18 = ssub.s32 %s13, 1
      %s19 = ssub.s32 %s13, 2
      %s26 = sadd.s32 1, %s21
      %p27 = scmp.ge.s32.totalorder %s26, 2
      %s28 = scalar_select %p27, 0, %s26
      %s29 = sadd.s32 1, %s20
      %s30 = scalar_select %p27, %s29, %s20
      %p31 = scmp.ge.s32.totalorder %s30, 3
      %s32 = scalar_select %p31, 0, %s30
      %s33 = ssub.s32 %s21, %s28
      %p34 = scmp.eq.s32.totalorder %s33, 0
      %s36 = sadd.s32 %s35, 1
      %s37 = scalar_select %p34, %s35, %s36
      %p40 = pneg %p34
      %p41 = scmp.eq.s32.totalorder %s13, 5
      %p42 = por %p40, %p41
      %p43 = scmp.ne.s32.totalorder %s35, %s38
      %p44 = scmp.eq.s32.totalorder %s13, 0
      %p45 = por %p43, %p44
      %p46 = scmp.ne.s32.totalorder %s35, %s38
      %p47 = scmp.eq.s32.totalorder %s18, 5
      %p48 = por %p46, %p47
      %p49 = scmp.ne.s32.totalorder %s38, %s39
      %p50 = scmp.eq.s32.totalorder %s18, 0
      %p51 = por %p49, %p50
      %p52 = scmp.ne.s32.totalorder %s38, %s39
      %p53 = scmp.eq.s32.totalorder %s19, 5
      %p54 = por %p52, %p53
      %p56 = scmp.ne.s32.totalorder %s39, %s55
      %p57 = scmp.eq.s32.totalorder %s19, 0
      %p58 = por %p56, %p57
      %s60 = sadd.s32 %s59, 1
      %p63 = scmp.eq.s32.totalorder %s13, 5
      %p64 = scmp.ne.s32.totalorder %s59, %s61
      %p65 = scmp.eq.s32.totalorder %s13, 0
      %p66 = por %p64, %p65
      %p67 = scmp.ne.s32.totalorder %s59, %s61
      %p68 = scmp.eq.s32.totalorder %s18, 5
      %p69 = por %p67, %p68
      %p70 = scmp.ne.s32.totalorder %s61, %s62
      %p71 = scmp.eq.s32.totalorder %s18, 0
      %p72 = por %p70, %p71
      %p73 = scmp.ne.s32.totalorder %s61, %s62
      %p74 = scmp.eq.s32.totalorder %s19, 5
      %p75 = por %p73, %p74
      %p77 = scmp.ne.s32.totalorder %s62, %s76
      %p78 = scmp.eq.s32.totalorder %s19, 0
      %p79 = por %p77, %p78
      %s81 = sadd.s32 %s80, 1
      %p84 = scmp.eq.s32.totalorder %s13, 5
      %p85 = scmp.ne.s32.totalorder %s80, %s82
      %p86 = scmp.eq.s32.totalorder %s13, 0
      %p87 = por %p85, %p86
      %p88 = scmp.ne.s32.totalorder %s80, %s82
      %p89 = scmp.eq.s32.totalorder %s18, 5
      %p90 = por %p88, %p89
      %p91 = scmp.ne.s32.totalorder %s82, %s83
      %p92 = scmp.eq.s32.totalorder %s18, 0
      %p93 = por %p91, %p92
      %p94 = scmp.ne.s32.totalorder %s82, %s83
      %p95 = scmp.eq.s32.totalorder %s19, 5
      %p96 = por %p94, %p95
      %p98 = scmp.ne.s32.totalorder %s83, %s97
      %p99 = scmp.eq.s32.totalorder %s19, 0
      %p100 = por %p98, %p99
      %s101 = ssub.s32 %s20, %s32
      %s102 = ssub.s32 %s21, %s28
      %s103 = sor.u32 %s101, %s102
      %p104 = scmp.eq.s32.totalorder %s103, 0
      %s106 = sadd.s32 %s105, 1
      %s107 = scalar_select %p104, %s105, %s106
      %p110 = pneg %p104
      %p111 = scmp.eq.s32.totalorder %s13, 5
      %p112 = por %p110, %p111
      %p113 = scmp.ne.s32.totalorder %s105, %s108
      %p114 = scmp.eq.s32.totalorder %s13, 0
      %p115 = por %p113, %p114
      %p116 = scmp.ne.s32.totalorder %s105, %s108
      %p117 = scmp.eq.s32.totalorder %s18, 5
      %p118 = por %p116, %p117
      %p119 = scmp.ne.s32.totalorder %s108, %s109
      %p120 = scmp.eq.s32.totalorder %s18, 0
      %p121 = por %p119, %p120
      %p122 = scmp.ne.s32.totalorder %s108, %s109
      %p123 = scmp.eq.s32.totalorder %s19, 5
      %p124 = por %p122, %p123
      %p126 = scmp.ne.s32.totalorder %s109, %s125
      %p127 = scmp.eq.s32.totalorder %s19, 0
      %p128 = por %p126, %p127
      %s129 = ssub.s32 %s20, %s32
      %p130 = scmp.eq.s32.totalorder %s129, 0
      %s132 = sadd.s32 %s131, 1
      %s133 = scalar_select %p130, %s131, %s132
      %p136 = pneg %p130
      %p137 = scmp.eq.s32.totalorder %s13, 5
      %p138 = por %p136, %p137
      %p139 = scmp.ne.s32.totalorder %s131, %s134
      %p140 = scmp.eq.s32.totalorder %s13, 0
      %p141 = por %p139, %p140
      %p142 = scmp.ne.s32.totalorder %s131, %s134
      %p143 = scmp.eq.s32.totalorder %s18, 5
      %p144 = por %p142, %p143
      %p145 = scmp.ne.s32.totalorder %s134, %s135
      %p146 = scmp.eq.s32.totalorder %s18, 0
      %p147 = por %p145, %p146
      %p148 = scmp.ne.s32.totalorder %s134, %s135
      %p149 = scmp.eq.s32.totalorder %s19, 5
      %p150 = por %p148, %p149
      %p152 = scmp.ne.s32.totalorder %s135, %s151
      %p153 = scmp.eq.s32.totalorder %s19, 0
      %p154 = por %p152, %p153
      %p155 = scmp.le.s32.totalorder 1, %s13
      %p156 = scmp.lt.s32.totalorder %s13, 7
      %p157 = pnand %p155, %p156
      %p158 = pneg %p157
      // Predicated region
      $region9: #{tpu_custom_call.1} parent=5 // pred_check
        _
      $region10: #{tpu_custom_call.1} parent=5 // pred_check_branch
        %160 = sbr.rel (%p157) target = $region12
      $region11: #{tpu_custom_call.1} parent=5 // pred_region
        %s161 = ssub.s32 %s13, 1
        // Predicated region
        $region13: #{tpu_custom_call.1} parent=11 // pred_check
          %p162 = pneg %p72
        $region14: #{tpu_custom_call.1} parent=11 // pred_check_branch
          %164 = sbr.rel (%p162) target = $region16
        $region15: #{tpu_custom_call.1} parent=11 // pred_region
          _
        $region16: #{tpu_custom_call.1} parent=11 // pred_fallthru
          _
        // Predicated region
        $region17: #{tpu_custom_call.1} parent=11 // pred_check
          %p165 = pneg %p93
        $region18: #{tpu_custom_call.1} parent=11 // pred_check_branch
          %167 = sbr.rel (%p165) target = $region20
        $region19: #{tpu_custom_call.1} parent=11 // pred_region
          _
        $region20: #{tpu_custom_call.1} parent=11 // pred_fallthru
          _
      $region12: #{tpu_custom_call.1} parent=5 // pred_fallthru
        _
      %p168 = scmp.lt.s32.totalorder %s13, 6
      // Predicated region
      $region21: #{tpu_custom_call.1} parent=5 // pred_check
        %p169 = pneg %p168
      $region22: #{tpu_custom_call.1} parent=5 // pred_check_branch
        %171 = sbr.rel (%p169) target = $region24
      $region23: #{tpu_custom_call.1} parent=5 // pred_region
        // Predicated region
        $region25: #{tpu_custom_call.1} parent=23 // pred_check
          %p172 = pneg %p45
        $region26: #{tpu_custom_call.1} parent=23 // pred_check_branch
          %174 = sbr.rel (%p172) target = $region28
        $region27: #{tpu_custom_call.1} parent=23 // pred_region
          %s175 = smul.u32 16, %s21
          %p176 = scmp.lt.s32.totalorder %s175, 31
          %s177 = scalar_select %p176, %s175, 31
          %s178 = smul.addr %s177, 8
          %s179 = scalar_lea.vmem %s0, %s178
          %s180 = smul.u32 16, %s21
        $region28: #{tpu_custom_call.1} parent=23 // pred_fallthru
          _
        // Predicated region
        $region29: #{tpu_custom_call.1} parent=23 // pred_check
          %p181 = pneg %p115
        $region30: #{tpu_custom_call.1} parent=23 // pred_check_branch
          %183 = sbr.rel (%p181) target = $region32
        $region31: #{tpu_custom_call.1} parent=23 // pred_region
          %s184 = sand.u32 %s105, 1
          %s185 = sand.u32 %s105, 1
          %s186 = smul.addr %s185, 8
          %s187 = scalar_lea.vmem [#allocation4], %s186
          %s188 = smul.u32 2, %s20
          %s189 = smul.addr %s188, 2
          %s190 = sadd.s32 %s21, %s189
          %s191 = smul.addr %s190, 4
          %s192 = scalar_lea.vmem %s3, %s191
          // Predicated region
          $region33: #{tpu_custom_call.1} parent=31 // pred_check
            _
          $region34: #{tpu_custom_call.1} parent=31 // pred_check_branch
            %194 = sbr.rel (0) target = $region36
          $region35: #{tpu_custom_call.1} parent=31 // pred_region
            // Predicated region
            $region37: #{tpu_custom_call.1} parent=35 // pred_check
              _
            $region38: #{tpu_custom_call.1} parent=35 // pred_check_branch
              %196 = sbr.rel target = $region40
            $region39: #{tpu_custom_call.1} parent=35 // pred_region
              // Predicated region
              $region52: #{tpu_custom_call.1} parent=39 // pred_check
                _
              $region53: #{tpu_custom_call.1} parent=39 // pred_check_branch
                %213 = sbr.rel (0) target = $region55
              $region54: #{tpu_custom_call.1} parent=39 // pred_region
                loop: start=0, step=1, limit=1
                $region56: #{tpu_custom_call.1} parent=54 // loop_pre_header
                  _
                $region57: #{tpu_custom_call.1} parent=54 // loop_header
                  %s215 = sphi 0, %s219
                  %p216 = scmp.ge.s32.totalorder %s215, 1
                  %s220 = sphi %s192, %s192
                  %s221 = sphi %s187, %s187
                $region58: #{tpu_custom_call.1} parent=54 // loop_header_branch
                  %218 = sbr.rel (%p216) target = $region62
                $region59: #{tpu_custom_call.1} parent=54 // loop_body
                  _
                $region60: #{tpu_custom_call.1} parent=54 // loop_footer
                  %s219 = sadd.s32 1, %s215
                $region61: #{tpu_custom_call.1} parent=54 // loop_footer_branch
                  %214 = sbr.rel target = $region57
                $region62: #{tpu_custom_call.1} parent=54 // loop_exit
                  _
                loop: start=0, step=1, limit=1
                $region63: #{tpu_custom_call.1} parent=54 // loop_pre_header
                  _
                $region64: #{tpu_custom_call.1} parent=54 // loop_header
                  %s224 = sphi 0, %s228
                  %p225 = scmp.ge.s32.totalorder %s224, 1
                  %s229 = sphi %s192, %s192
                  %s230 = sphi %s187, %s187
                $region65: #{tpu_custom_call.1} parent=54 // loop_header_branch
                  %227 = sbr.rel (%p225) target = $region69
                $region66: #{tpu_custom_call.1} parent=54 // loop_body
                  %v231 = vld [vmem:[%s229] sm:$0xf]
                  %232 = vst [vmem:[%s230] sm:$0xf] %v231
                  %v233 = vld [vmem:[%s229 + $0x8] sm:$0xf]
                  %234 = vst [vmem:[%s230 + $0x4] sm:$0xf] %v233
                $region67: #{tpu_custom_call.1} parent=54 // loop_footer
                  %s228 = sadd.s32 1, %s224
                $region68: #{tpu_custom_call.1} parent=54 // loop_footer_branch
                  %223 = sbr.rel target = $region64
                $region69: #{tpu_custom_call.1} parent=54 // loop_exit
                  _
              $region55: #{tpu_custom_call.1} parent=39 // pred_fallthru
                _
            $region40: #{tpu_custom_call.1} parent=35 // pred_fallthru
              _
            // Predicated region
            $region41: #{tpu_custom_call.1} parent=35 // pred_check
              _
            $region42: #{tpu_custom_call.1} parent=35 // pred_check_branch
              %198 = sbr.rel (0) target = $region44
            $region43: #{tpu_custom_call.1} parent=35 // pred_region
              loop: start=0, step=1, limit=1
              $region45: #{tpu_custom_call.1} parent=43 // loop_pre_header
                _
              $region46: #{tpu_custom_call.1} parent=43 // loop_header
                %s201 = sphi 0, %s205
                %p202 = scmp.ge.s32.totalorder %s201, 1
                %s206 = sphi %s192, %s192
                %s207 = sphi %s187, %s187
              $region47: #{tpu_custom_call.1} parent=43 // loop_header_branch
                %204 = sbr.rel (%p202) target = $region51
              $region48: #{tpu_custom_call.1} parent=43 // loop_body
                %v208 = vld [vmem:[%s206] sm:$0xf]
                %209 = vst [vmem:[%s207] sm:$0xf] %v208
                %v210 = vld [vmem:[%s206 + $0x8] sm:$0xf]
                %211 = vst [vmem:[%s207 + $0x4] sm:$0xf] %v210
              $region49: #{tpu_custom_call.1} parent=43 // loop_footer
                %s205 = sadd.s32 1, %s201
              $region50: #{tpu_custom_call.1} parent=43 // loop_footer_branch
                %200 = sbr.rel target = $region46
              $region51: #{tpu_custom_call.1} parent=43 // loop_exit
                _
            $region44: #{tpu_custom_call.1} parent=35 // pred_fallthru
              _
          $region36: #{tpu_custom_call.1} parent=31 // pred_fallthru
            _
          %235 = vnop
        $region32: #{tpu_custom_call.1} parent=23 // pred_fallthru
          _
      $region24: #{tpu_custom_call.1} parent=5 // pred_fallthru
        _
      %p236 = scmp.le.s32.totalorder 1, %s13
      %p237 = scmp.lt.s32.totalorder %s13, 7
      %p238 = pnand %p236, %p237
      %p239 = pneg %p238
      // Predicated region
      $region70: #{tpu_custom_call.1} parent=5 // pred_check
        _
      $region71: #{tpu_custom_call.1} parent=5 // pred_check_branch
        %241 = sbr.rel (%p238) target = $region73
      $region72: #{tpu_custom_call.1} parent=5 // pred_region
        %s242 = ssub.s32 %s13, 1
        %s243 = sand.u32 %s108, 1
        %s244 = sand.u32 %s108, 1
        %s245 = smul.addr %s244, 8
        %s246 = scalar_lea.vmem [#allocation4], %s245
        // Predicated region
        $region74: #{tpu_custom_call.1} parent=72 // pred_check
          %p247 = pneg %p121
        $region75: #{tpu_custom_call.1} parent=72 // pred_check_branch
          %249 = sbr.rel (%p247) target = $region77
        $region76: #{tpu_custom_call.1} parent=72 // pred_region
          _
        $region77: #{tpu_custom_call.1} parent=72 // pred_fallthru
          _
        %s250 = smul.u32 16, %s23
        %p251 = scmp.lt.s32.totalorder %s250, 31
        %s252 = scalar_select %p251, %s250, 31
        %s253 = smul.addr %s252, 8
        %s254 = scalar_lea.vmem %s0, %s253
        %p255 = pneg %p51
        %p256 = pneg %p48
        %p257 = pneg %p72
        %p258 = pneg %p69
        %p259 = pneg %p93
        %p260 = pneg %p90
        %s261 = sand.u32 %s108, 1
        %s262 = sand.u32 %s108, 1
        %s263 = smul.addr %s262, 8
        %s264 = scalar_lea.vmem [#allocation4], %s263
        %p265 = pneg %p121
        %p266 = pneg %p118
        %p267 = pneg %p147
        %p268 = pneg %p144
        %s269 = sand.u32 %s134, 1
        %s270 = scalar_lea.sflag [#allocation6], %s269
        %s271 = sand.u32 %s134, 1
        %s272 = smul.addr %s271, 16
        %s273 = scalar_lea.vmem [#allocation5], %s272
        %s274 = smul.u32 16, %s23
        %p275 = scmp.lt.s32.totalorder %s274, 31
        %s276 = scalar_select %p275, %s274, 31
        %s277 = smul.addr %s276, 8
        %s278 = scalar_lea.vmem %s0, %s277
        %s279 = smul.u32 16, %s23
        %s280 = smul.u32 2, %s22
        %s281 = smul.u32 2, %s22
        %p283 = scmp.eq.s32.totalorder %s23, 0
        // Predicated region
        $region78: #{tpu_custom_call.1} parent=72 // pred_check
          %p284 = pneg %p283
        $region79: #{tpu_custom_call.1} parent=72 // pred_check_branch
          %286 = sbr.rel (%p284) target = $region81
        $region80: #{tpu_custom_call.1} parent=72 // pred_region
          %287 = vst [vmem:[#allocation2] sm:$0xff] 0.0
          %288 = vst [vmem:[#allocation2 + $0x8] sm:$0xff] 0.0
          %vm289 = vcmask 0
          %290 = vst.msk [vmem:[#allocation3] sm:$0x1] %vm289, -inf
        $region81: #{tpu_custom_call.1} parent=72 // pred_fallthru
          _
        %v291 = vld [vmem:[%s278] sm:$0xff]
        %v292 = vld [vmem:[%s278 + $0x8] sm:$0xff]
        %v293 = vld [vmem:[%s278 + $0x10] sm:$0xff]
        %v294 = vld [vmem:[%s278 + $0x18] sm:$0xff]
        %v295 = vld [vmem:[%s278 + $0x20] sm:$0xff]
        %v296 = vld [vmem:[%s278 + $0x28] sm:$0xff]
        %v297 = vld [vmem:[%s278 + $0x30] sm:$0xff]
        %v298 = vld [vmem:[%s278 + $0x38] sm:$0xff]
        %v299 = vld [vmem:[%s278 + $0x40] sm:$0xff]
        %v300 = vld [vmem:[%s278 + $0x48] sm:$0xff]
        %v301 = vld [vmem:[%s278 + $0x50] sm:$0xff]
        %v302 = vld [vmem:[%s278 + $0x58] sm:$0xff]
        %v303 = vld [vmem:[%s278 + $0x60] sm:$0xff]
        %v304 = vld [vmem:[%s278 + $0x68] sm:$0xff]
        %v305 = vld [vmem:[%s278 + $0x70] sm:$0xff]
        %v306 = vld [vmem:[%s278 + $0x78] sm:$0xff]
        %v307 = vld [vmem:[%s1] sm:$0xff]
        %v308 = vld [vmem:[%s1 + $0x8] sm:$0xff]
        %v309 = vld [vmem:[%s1 + $0x10] sm:$0xff]
        %v310 = vld [vmem:[%s1 + $0x18] sm:$0xff]
        %v311 = vld [vmem:[%s1 + $0x20] sm:$0x1]
        %v312 = vld [vmem:[%s2] sm:$0x1]
        %v314 = vlaneseq
        %v315 = vshrl.u32 %v314, 7
        %v316 = vsub.s32 0, %v315
        %v317 = vrot.slane %v312, %v316
        %vm319 = vcmask 269312
        %v321 = vsel %vm319, %v291, 0
        %v324 = vsel %vm319, %v292, 0
        %v327 = vsel %vm319, %v293, 0
        %v330 = vsel %vm319, %v294, 0
        %v333 = vsel %vm319, %v295, 0
        %v336 = vsel %vm319, %v296, 0
        %v339 = vsel %vm319, %v297, 0
        %v342 = vsel %vm319, %v298, 0
        %v345 = vsel %vm319, %v299, 0
        %v348 = vsel %vm319, %v300, 0
        %v351 = vsel %vm319, %v301, 0
        %v354 = vsel %vm319, %v302, 0
        %v357 = vsel %vm319, %v303, 0
        %v360 = vsel %vm319, %v304, 0
        %v363 = vsel %vm319, %v305, 0
        %v366 = vsel %vm319, %v306, 0
        %vm368 = vcmask 1040384
        %v370 = vsel %vm368, %v311, 0
        %372 = vmatprep.subr.mxu0 0.0
        %373 = vmatpush1.msra.mxu0 %v307
        %374 = vmatprep.subr.mxu0 0.0
        %375 = vmatpush1.msra.mxu0 %v308
        %376 = vmatprep.subr.mxu0 0.0
        %377 = vmatpush1.msra.mxu0 %v309
        %378 = vmatprep.subr.mxu0 0.0
        %379 = vmatpush1.msra.mxu0 %v310
        %380 = vmatprep.subr.mxu0 0.0
        %381 = vmatpush1.msra.mxu0 %v370
        %382 = vmatprep.subr.mxu0 0.0
        %383 = vmatpush1.msra.mxu0 0.0
        %384 = vmatprep.subr.mxu0 0.0
        %385 = vmatpush1.msra.mxu0 0.0
        %386 = vmatprep.subr.mxu0 0.0
        %387 = vmatpush1.msra.mxu0 0.0
        %388 = vmatprep.subr.mxu0 0.0
        %389 = vmatpush1.msra.mxu0 0.0
        %390 = vmatprep.subr.mxu0 0.0
        %391 = vmatpush1.msra.mxu0 0.0
        %392 = vmatprep.subr.mxu0 0.0
        %393 = vmatpush1.msra.mxu0 0.0
        %394 = vmatprep.subr.mxu0 0.0
        %395 = vmatpush1.msra.mxu0 0.0
        %396 = vmatprep.subr.mxu0 0.0
        %397 = vmatpush1.msra.mxu0 0.0
        %398 = vmatprep.subr.mxu0 0.0
        %399 = vmatpush1.msra.mxu0 0.0
        %400 = vmatprep.subr.mxu0 0.0
        %401 = vmatpush1.msra.mxu0 0.0
        %402 = vmatprep.subr.mxu0 0.0
        %403 = vmatpush1.msra.mxu0 0.0
        %404 = vmatprep.subr.mxu0 0.0
        %405 = vmatpush1.msra.mxu0 0.0
        %406 = vmatprep.subr.mxu0 0.0
        %407 = vmatpush1.msra.mxu0 0.0
        %408 = vmatprep.subr.mxu0 0.0
        %409 = vmatpush1.msra.mxu0 0.0
        %410 = vmatprep.subr.mxu0 0.0
        %411 = vmatpush1.msra.mxu0 0.0
        %412 = vmatprep.subr.mxu0 0.0
        %413 = vmatpush1.msra.mxu0 0.0
        %414 = vmatprep.subr.mxu0 0.0
        %415 = vmatpush1.msra.mxu0 0.0
        %416 = vmatprep.subr.mxu0 0.0
        %417 = vmatpush1.msra.mxu0 0.0
        %418 = vmatprep.subr.mxu0 0.0
        %419 = vmatpush1.msra.mxu0 0.0
        %420 = vmatprep.subr.mxu0 0.0
        %421 = vmatpush1.msra.mxu0 0.0
        %422 = vmatprep.subr.mxu0 0.0
        %423 = vmatpush1.msra.mxu0 0.0
        %424 = vmatprep.subr.mxu0 0.0
        %425 = vmatpush1.msra.mxu0 0.0
        %426 = vmatprep.subr.mxu0 0.0
        %427 = vmatpush1.msra.mxu0 0.0
        %428 = vmatprep.subr.mxu0 0.0
        %429 = vmatpush1.msra.mxu0 0.0
        %430 = vmatprep.subr.mxu0 0.0
        %431 = vmatpush1.msra.mxu0 0.0
        %432 = vmatprep.subr.mxu0 0.0
        %433 = vmatpush1.msra.mxu0 0.0
        %434 = vmatprep.subr.mxu0 0.0
        %435 = vmatpush1.msra.mxu0 0.0
        %436 = vmatprep.mubr.f32.mxu0 0.0
        %437 = vmatmul.mubr.f32.gmra.mrb[0].mxu0 %v321
        %v438 = vpop.f32.mrb[0].mxu0
        %v439 = vadd.f32 %v317, %v438
        %v440 = vpop.f32.mrb[0].mxu0
        %441 = vmatprep.mubr.f32.mxu0 0.0
        %442 = vmatmul.mubr.f32.gmra.mrb[0].mxu0 %v324
        %v443 = vpop.f32.mrb[0].mxu0
        %v444 = vadd.f32 %v317, %v443
        %v445 = vpop.f32.mrb[0].mxu0
        %446 = vmatprep.mubr.f32.mxu0 0.0
        %447 = vmatmul.mubr.f32.gmra.mrb[0].mxu0 %v327
        %v448 = vpop.f32.mrb[0].mxu0
        %v449 = vadd.f32 %v317, %v448
        %v450 = vpop.f32.mrb[0].mxu0
        %451 = vmatprep.mubr.f32.mxu0 0.0
        %452 = vmatmul.mubr.f32.gmra.mrb[0].mxu0 %v330
        %v453 = vpop.f32.mrb[0].mxu0
        %v454 = vadd.f32 %v317, %v453
        %v455 = vpop.f32.mrb[0].mxu0
        %456 = vmatprep.mubr.f32.mxu0 0.0
        %457 = vmatmul.mubr.f32.gmra.mrb[0].mxu0 %v333
        %v458 = vpop.f32.mrb[0].mxu0
        %v459 = vadd.f32 %v317, %v458
        %v460 = vpop.f32.mrb[0].mxu0
        %461 = vmatprep.mubr.f32.mxu0 0.0
        %462 = vmatmul.mubr.f32.gmra.mrb[0].mxu0 %v336
        %v463 = vpop.f32.mrb[0].mxu0
        %v464 = vadd.f32 %v317, %v463
        %v465 = vpop.f32.mrb[0].mxu0
        %466 = vmatprep.mubr.f32.mxu0 0.0
        %467 = vmatmul.mubr.f32.gmra.mrb[0].mxu0 %v339
        %v468 = vpop.f32.mrb[0].mxu0
        %v469 = vadd.f32 %v317, %v468
        %v470 = vpop.f32.mrb[0].mxu0
        %471 = vmatprep.mubr.f32.mxu0 0.0
        %472 = vmatmul.mubr.f32.gmra.mrb[0].mxu0 %v342
        %v473 = vpop.f32.mrb[0].mxu0
        %v474 = vadd.f32 %v317, %v473
        %v475 = vpop.f32.mrb[0].mxu0
        %476 = vmatprep.mubr.f32.mxu0 0.0
        %477 = vmatmul.mubr.f32.gmra.mrb[0].mxu0 %v345
        %v478 = vpop.f32.mrb[0].mxu0
        %v479 = vadd.f32 %v317, %v478
        %v480 = vpop.f32.mrb[0].mxu0
        %481 = vmatprep.mubr.f32.mxu0 0.0
        %482 = vmatmul.mubr.f32.gmra.mrb[0].mxu0 %v348
        %v483 = vpop.f32.mrb[0].mxu0
        %v484 = vadd.f32 %v317, %v483
        %v485 = vpop.f32.mrb[0].mxu0
        %486 = vmatprep.mubr.f32.mxu0 0.0
        %487 = vmatmul.mubr.f32.gmra.mrb[0].mxu0 %v351
        %v488 = vpop.f32.mrb[0].mxu0
        %v489 = vadd.f32 %v317, %v488
        %v490 = vpop.f32.mrb[0].mxu0
        %491 = vmatprep.mubr.f32.mxu0 0.0
        %492 = vmatmul.mubr.f32.gmra.mrb[0].mxu0 %v354
        %v493 = vpop.f32.mrb[0].mxu0
        %v494 = vadd.f32 %v317, %v493
        %v495 = vpop.f32.mrb[0].mxu0
        %496 = vmatprep.mubr.f32.mxu0 0.0
        %497 = vmatmul.mubr.f32.gmra.mrb[0].mxu0 %v357
        %v498 = vpop.f32.mrb[0].mxu0
        %v499 = vadd.f32 %v317, %v498
        %v500 = vpop.f32.mrb[0].mxu0
        %501 = vmatprep.mubr.f32.mxu0 0.0
        %502 = vmatmul.mubr.f32.gmra.mrb[0].mxu0 %v360
        %v503 = vpop.f32.mrb[0].mxu0
        %v504 = vadd.f32 %v317, %v503
        %v505 = vpop.f32.mrb[0].mxu0
        %506 = vmatprep.mubr.f32.mxu0 0.0
        %507 = vmatmul.mubr.f32.gmra.mrb[0].mxu0 %v363
        %v508 = vpop.f32.mrb[0].mxu0
        %v509 = vadd.f32 %v317, %v508
        %v510 = vpop.f32.mrb[0].mxu0
        %511 = vmatprep.mubr.f32.mxu0 0.0
        %512 = vmatmul.mubr.f32.gmra.mrb[0].mxu0 %v366
        %v513 = vpop.f32.mrb[0].mxu0
        %v514 = vadd.f32 %v317, %v513
        %v515 = vpop.f32.mrb[0].mxu0
        %516 = vdwg.mxu0
        %v517 = vld [vmem:[#allocation3] sm:$0x1]
        %vm518 = vcmask 277768
        %v519 = vsel %vm518, %v439, -inf
        %v520 = vsel %vm518, %v444, -inf
        %v521 = vsel %vm518, %v449, -inf
        %v522 = vsel %vm518, %v454, -inf
        %v523 = vsel %vm518, %v459, -inf
        %v524 = vmax.f32 %v519, %v523
        %v525 = vsel %vm518, %v464, -inf
        %v526 = vmax.f32 %v520, %v525
        %v527 = vsel %vm518, %v469, -inf
        %v528 = vmax.f32 %v521, %v527
        %v529 = vsel %vm518, %v474, -inf
        %v530 = vmax.f32 %v522, %v529
        %v531 = vsel %vm518, %v479, -inf
        %v532 = vmax.f32 %v524, %v531
        %v533 = vsel %vm518, %v484, -inf
        %v534 = vmax.f32 %v526, %v533
        %v535 = vsel %vm518, %v489, -inf
        %v536 = vmax.f32 %v528, %v535
        %v537 = vsel %vm518, %v494, -inf
        %v538 = vmax.f32 %v530, %v537
        %v539 = vsel %vm518, %v499, -inf
        %v540 = vmax.f32 %v532, %v539
        %v541 = vsel %vm518, %v504, -inf
        %v542 = vmax.f32 %v534, %v541
        %v543 = vsel %vm518, %v509, -inf
        %v544 = vmax.f32 %v536, %v543
        %v545 = vsel %vm518, %v514, -inf
        %v546 = vmax.f32 %v538, %v545
        %v547 = vmax.f32 %v540, %v542
        %v548 = vmax.f32 %v544, %v546
        %v549 = vmax.f32 %v547, %v548
        %550 = vmax.xlane.f32.xlu0 %v549
        %v551 = vpop.xlane.xlu0 %550
        %v552 = vrot.slane %v551, 4
        %v553 = vmax.f32 %v551, %v552
        %v554 = vrot.slane %v553, 2
        %v555 = vmax.f32 %v553, %v554
        %v556 = vrot.slane %v555, 1
        %v557 = vmax.f32 %v555, %v556
        %s558 = vtos %v557
        %v559 = vstv %s558
        %v560 = vmax.f32 %v517, %v559
        %vm561 = vcmask 0
        %562 = vst.msk [vmem:[#allocation3] sm:$0x1] %vm561, %v560
        %v563 = vsub.f32 %v517, %v560
        %v564 = vmul.f32 %v563, 1.442695
        %v565 = vpow.pop %v564
        %v567 = vlaneseq
        %v568 = vshrl.u32 %v567, 7
        %v569 = vsub.s32 0, %v568
        %v570 = vrot.slane %v560, %v569
        %571 = vrot.lane.b32.xlu0 %v570, 33
        %v572 = vpop.permute.xlu0 %571
        %v574 = vsub.f32 %v439, %v572
        %v575 = vsub.f32 %v444, %v572
        %v576 = vsub.f32 %v449, %v572
        %v577 = vsub.f32 %v454, %v572
        %v578 = vsub.f32 %v459, %v572
        %v579 = vsub.f32 %v464, %v572
        %v580 = vsub.f32 %v469, %v572
        %v581 = vsub.f32 %v474, %v572
        %v582 = vsub.f32 %v479, %v572
        %v583 = vsub.f32 %v484, %v572
        %v584 = vsub.f32 %v489, %v572
        %v585 = vsub.f32 %v494, %v572
        %v586 = vsub.f32 %v499, %v572
        %v587 = vsub.f32 %v504, %v572
        %v588 = vsub.f32 %v509, %v572
        %v589 = vsub.f32 %v514, %v572
        %v590 = vmul.f32 %v574, 1.442695
        %v591 = vpow.pop %v590
        %v592 = vmul.f32 %v575, 1.442695
        %v593 = vpow.pop %v592
        %v594 = vmul.f32 %v576, 1.442695
        %v595 = vpow.pop %v594
        %v596 = vmul.f32 %v577, 1.442695
        %v597 = vpow.pop %v596
        %v598 = vmul.f32 %v578, 1.442695
        %v599 = vpow.pop %v598
        %v600 = vmul.f32 %v579, 1.442695
        %v601 = vpow.pop %v600
        %v602 = vmul.f32 %v580, 1.442695
        %v603 = vpow.pop %v602
        %v604 = vmul.f32 %v581, 1.442695
        %v605 = vpow.pop %v604
        %v606 = vmul.f32 %v582, 1.442695
        %v607 = vpow.pop %v606
        %v608 = vmul.f32 %v583, 1.442695
        %v609 = vpow.pop %v608
        %v610 = vmul.f32 %v584, 1.442695
        %v611 = vpow.pop %v610
        %v612 = vmul.f32 %v585, 1.442695
        %v613 = vpow.pop %v612
        %v614 = vmul.f32 %v586, 1.442695
        %v615 = vpow.pop %v614
        %v616 = vmul.f32 %v587, 1.442695
        %v617 = vpow.pop %v616
        %v618 = vmul.f32 %v588, 1.442695
        %v619 = vpow.pop %v618
        %v620 = vmul.f32 %v589, 1.442695
        %v621 = vpow.pop %v620
        %v622 = vmax.f32 %v439, 0.0
        %v623 = vmax.f32 %v444, 0.0
        %v624 = vmax.f32 %v449, 0.0
        %v625 = vmax.f32 %v454, 0.0
        %v626 = vmax.f32 %v459, 0.0
        %v627 = vmax.f32 %v464, 0.0
        %v628 = vmax.f32 %v469, 0.0
        %v629 = vmax.f32 %v474, 0.0
        %v630 = vmax.f32 %v479, 0.0
        %v631 = vmax.f32 %v484, 0.0
        %v632 = vmax.f32 %v489, 0.0
        %v633 = vmax.f32 %v494, 0.0
        %v634 = vmax.f32 %v499, 0.0
        %v635 = vmax.f32 %v504, 0.0
        %v636 = vmax.f32 %v509, 0.0
        %v637 = vmax.f32 %v514, 0.0
        %639 = vset.pattern.permute.xlu0 33
        %640 = vperm.xlu0 %639, %v591
        %v641 = vpop.permute.xlu0 %640
        %644 = vset.pattern.permute.xlu0 33
        %645 = vperm.xlu0 %644, %v593
        %v646 = vpop.permute.xlu0 %645
        %649 = vset.pattern.permute.xlu0 33
        %650 = vperm.xlu0 %649, %v595
        %v651 = vpop.permute.xlu0 %650
        %654 = vset.pattern.permute.xlu0 33
        %655 = vperm.xlu0 %654, %v597
        %v656 = vpop.permute.xlu0 %655
        %659 = vset.pattern.permute.xlu0 33
        %660 = vperm.xlu0 %659, %v599
        %v661 = vpop.permute.xlu0 %660
        %664 = vset.pattern.permute.xlu0 33
        %665 = vperm.xlu0 %664, %v601
        %v666 = vpop.permute.xlu0 %665
        %669 = vset.pattern.permute.xlu0 33
        %670 = vperm.xlu0 %669, %v603
        %v671 = vpop.permute.xlu0 %670
        %674 = vset.pattern.permute.xlu0 33
        %675 = vperm.xlu0 %674, %v605
        %v676 = vpop.permute.xlu0 %675
        %679 = vset.pattern.permute.xlu0 33
        %680 = vperm.xlu0 %679, %v607
        %v681 = vpop.permute.xlu0 %680
        %684 = vset.pattern.permute.xlu0 33
        %685 = vperm.xlu0 %684, %v609
        %v686 = vpop.permute.xlu0 %685
        %689 = vset.pattern.permute.xlu0 33
        %690 = vperm.xlu0 %689, %v611
        %v691 = vpop.permute.xlu0 %690
        %694 = vset.pattern.permute.xlu0 33
        %695 = vperm.xlu0 %694, %v613
        %v696 = vpop.permute.xlu0 %695
        %699 = vset.pattern.permute.xlu0 33
        %700 = vperm.xlu0 %699, %v615
        %v701 = vpop.permute.xlu0 %700
        %704 = vset.pattern.permute.xlu0 33
        %705 = vperm.xlu0 %704, %v617
        %v706 = vpop.permute.xlu0 %705
        %709 = vset.pattern.permute.xlu0 33
        %710 = vperm.xlu0 %709, %v619
        %v711 = vpop.permute.xlu0 %710
        %714 = vset.pattern.permute.xlu0 33
        %715 = vperm.xlu0 %714, %v621
        %v716 = vpop.permute.xlu0 %715
        %v718 = vmul.f32 %v622, %v641
        %v719 = vmul.f32 %v623, %v646
        %v720 = vmul.f32 %v624, %v651
        %v721 = vmul.f32 %v625, %v656
        %v722 = vmul.f32 %v626, %v661
        %v723 = vmul.f32 %v627, %v666
        %v724 = vmul.f32 %v628, %v671
        %v725 = vmul.f32 %v629, %v676
        %v726 = vmul.f32 %v630, %v681
        %v727 = vmul.f32 %v631, %v686
        %v728 = vmul.f32 %v632, %v691
        %v729 = vmul.f32 %v633, %v696
        %v730 = vmul.f32 %v634, %v701
        %v731 = vmul.f32 %v635, %v706
        %v732 = vmul.f32 %v636, %v711
        %v733 = vmul.f32 %v637, %v716
        %v734 = vpack.c.bf16 %v719, %v718
        %v735 = vpack.c.bf16 %v721, %v720
        %v736 = vpack.c.bf16 %v723, %v722
        %v737 = vpack.c.bf16 %v725, %v724
        %v738 = vpack.c.bf16 %v727, %v726
        %v739 = vpack.c.bf16 %v729, %v728
        %v740 = vpack.c.bf16 %v731, %v730
        %v741 = vpack.c.bf16 %v733, %v732
        %v742 = vld [vmem:[#allocation2] sm:$0xff]
        %v743 = vld [vmem:[#allocation2 + $0x8] sm:$0xff]
        %v745 = vlaneseq
        %v746 = vshrl.u32 %v745, 7
        %v747 = vsub.s32 0, %v746
        %v748 = vrot.slane %v565, %v747
        %749 = vset.pattern.permute.xlu0 0
        %750 = vperm.xlu0 %749, %v748
        %v751 = vpop.permute.xlu0 %750
        %v753 = vmul.f32 %v742, %v751
        %v754 = vmul.f32 %v743, %v751
        %v755 = vld [vmem:[%s246] sm:$0xf]
        %v756 = vld [vmem:[%s246 + $0x4] sm:$0xf]
        %v759 = vunpack.c.l.b16 %v755
        %v760 = vunpack.c.l.b16 %v756
        %v761 = vpack.c.b16 %v760, %v759
        %763 = vmatprep.subr.bf16.mxu0 0
        %764 = vmatpush1.bf16.msra.mxu0 %v734
        %765 = vmatprep.subr.bf16.mxu0 0
        %766 = vmatpush1.bf16.msra.mxu0 %v735
        %767 = vmatprep.subr.bf16.mxu0 0
        %768 = vmatpush1.bf16.msra.mxu0 %v736
        %769 = vmatprep.subr.bf16.mxu0 0
        %770 = vmatpush1.bf16.msra.mxu0 %v737
        %771 = vmatprep.subr.bf16.mxu0 0
        %772 = vmatpush1.bf16.msra.mxu0 %v738
        %773 = vmatprep.subr.bf16.mxu0 0
        %774 = vmatpush1.bf16.msra.mxu0 %v739
        %775 = vmatprep.subr.bf16.mxu0 0
        %776 = vmatpush1.bf16.msra.mxu0 %v740
        %777 = vmatprep.subr.bf16.mxu0 0
        %778 = vmatpush1.bf16.msra.mxu0 %v741
        %779 = vmatprep.subr.bf16.mxu0 0
        %780 = vmatpush1.bf16.msra.mxu0 0
        %781 = vmatprep.subr.bf16.mxu0 0
        %782 = vmatpush1.bf16.msra.mxu0 0
        %783 = vmatprep.subr.bf16.mxu0 0
        %784 = vmatpush1.bf16.msra.mxu0 0
        %785 = vmatprep.subr.bf16.mxu0 0
        %786 = vmatpush1.bf16.msra.mxu0 0
        %787 = vmatprep.subr.bf16.mxu0 0
        %788 = vmatpush1.bf16.msra.mxu0 0
        %789 = vmatprep.subr.bf16.mxu0 0
        %790 = vmatpush1.bf16.msra.mxu0 0
        %791 = vmatprep.subr.bf16.mxu0 0
        %792 = vmatpush1.bf16.msra.mxu0 0
        %793 = vmatprep.subr.bf16.mxu0 0
        %794 = vmatpush1.bf16.msra.mxu0 0
        %795 = vmatprep.mubr.bf16.mxu0 0
        %796 = vmatmul.mubr.bf16.gmra.mrb[0].mxu0 %v761
        %v797 = vpop.f32.mrb[0].mxu0
        %v798 = vadd.f32 0.0, %v797
        %v799 = vpop.f32.mrb[0].mxu0
        %v800 = vpop.f32.mrb[0].mxu0
        %v801 = vadd.f32 0.0, %v800
        %v802 = vpop.f32.mrb[0].mxu0
        %803 = vdwg.mxu0
        %v804 = vadd.f32 %v753, %v798
        %v805 = vadd.f32 %v754, %v801
        %806 = vst [vmem:[#allocation2] sm:$0xff] %v804
        %807 = vst [vmem:[#allocation2 + $0x8] sm:$0xff] %v805
        %p808 = scmp.eq.s32.totalorder %s23, 1
        // Predicated region
        $region82: #{tpu_custom_call.1} parent=72 // pred_check
          %p809 = pneg %p808
        $region83: #{tpu_custom_call.1} parent=72 // pred_check_branch
          %811 = sbr.rel (%p809) target = $region85
        $region84: #{tpu_custom_call.1} parent=72 // pred_region
          %v812 = vld [vmem:[#allocation2] sm:$0xff]
          %v813 = vld [vmem:[#allocation2 + $0x8] sm:$0xff]
          %v814 = vadd.f32 %v812, 1e-06
          %v815 = vadd.f32 %v813, 1e-06
          %v816 = vrcp.pop %v814
          %v817 = vrcp.pop %v815
          %819 = vset.pattern.permute.xlu0 32
          %820 = vperm.xlu0 %819, %v816
          %v821 = vpop.permute.xlu0 %820
          %824 = vset.pattern.permute.xlu0 32
          %825 = vperm.xlu0 %824, %v817
          %v826 = vpop.permute.xlu0 %825
          %v828 = vmul.f32 %v812, %v821
          %v829 = vmul.f32 %v813, %v826
          %830 = vst [vmem:[%s273] sm:$0xff] %v828
          %831 = vst [vmem:[%s273 + $0x8] sm:$0xff] %v829
        $region85: #{tpu_custom_call.1} parent=72 // pred_fallthru
          _
        %s832 = sand.u32 %s134, 1
        %s833 = scalar_lea.sflag [#allocation6], %s832
        %s834 = sand.u32 %s134, 1
        %s835 = smul.addr %s834, 16
        %s836 = scalar_lea.vmem [#allocation5], %s835
        // Predicated region
        $region86: #{tpu_custom_call.1} parent=72 // pred_check
          %p837 = pneg %p144
        $region87: #{tpu_custom_call.1} parent=72 // pred_check_branch
          %839 = sbr.rel (%p837) target = $region89
        $region88: #{tpu_custom_call.1} parent=72 // pred_region
          %s840 = smul.u32 2, %s22
          %s842 = ssub.s32 256, 256
          %843 = vsyncadd %s833, %s842
          %s844 = smul.addr %s840, 128
          %s845 = scalar_lea.hbm %s4, %s844
          %s846 = sshll.u32 %s836, 4
          %s847 = int_to_ptr.vmem [resolvable:$true] %s846
          %852 = dma.vmem_to_hbm [thread:$0]  %s847, 256, %s845, %s833, 128, 128, 8
        $region89: #{tpu_custom_call.1} parent=72 // pred_fallthru
          _
      $region73: #{tpu_custom_call.1} parent=5 // pred_fallthru
        _
      %p853 = scmp.le.s32.totalorder 2, %s13
      // Predicated region
      $region90: #{tpu_custom_call.1} parent=5 // pred_check
        %p854 = pneg %p853
      $region91: #{tpu_custom_call.1} parent=5 // pred_check_branch
        %856 = sbr.rel (%p854) target = $region93
      $region92: #{tpu_custom_call.1} parent=5 // pred_region
        %s857 = ssub.s32 %s13, 2
        // Predicated region
        $region94: #{tpu_custom_call.1} parent=92 // pred_check
          %p858 = pneg %p150
        $region95: #{tpu_custom_call.1} parent=92 // pred_check_branch
          %860 = sbr.rel (%p858) target = $region97
        $region96: #{tpu_custom_call.1} parent=92 // pred_region
          %s861 = sand.u32 %s135, 1
          %s862 = scalar_lea.sflag [#allocation6], %s861
          %s863 = sand.u32 %s135, 1
          %s864 = smul.addr %s863, 16
          %s865 = scalar_lea.vmem [#allocation5], %s864
          %866 = dma.done %s862, 256
        $region97: #{tpu_custom_call.1} parent=92 // pred_fallthru
          _
      $region93: #{tpu_custom_call.1} parent=5 // pred_fallthru
        _
    $region6: #{tpu_custom_call.1} parent=1 // loop_footer
      %s17 = sadd.s32 1, %s13
    $region7: #{tpu_custom_call.1} parent=1 // loop_footer_branch
      %12 = sbr.rel target = $region3
    $region8: #{tpu_custom_call.1} parent=1 // loop_exit
      _
    %867 = vsyncpa [#allocation6], 1
    %s868 = scalar_lea.sflag [#allocation6], 1
    %869 = vsyncpa %s868, 1

</llo_original>
